<compile_context>
chip_gen: v7x
topology: tpu7x:2x2x1
jax: 0.10.0
libtpu: 0.0.40
codegen_flags: <defaults>
</compile_context>

<pallas_src>
from functools import partial

import jax
import jax.numpy as jnp
from jax.experimental import pallas as pl
from jax.experimental.pallas import tpu as pltpu


def _round_up(x, m):
    return (x + m - 1) // m * m


def _softplus(x):
    # Branch-free, numerically stable softplus.  Matches
    # torch.nn.Softplus(beta=1, threshold=20) to f32 eps: for x > 20 the
    # log1p(exp(-x)) term underflows to 0, reproducing the linear branch.
    return jnp.maximum(x, 0.0) + jnp.log1p(jnp.exp(-jnp.abs(x)))


def _mlp_kernel(*refs, num_layers):
    # refs = (x_ref, wT_0..wT_{L-1}, b_0..b_{L-1}, out_ref)
    x_ref = refs[0]
    wt_refs = refs[1:1 + num_layers]
    b_refs = refs[1 + num_layers:1 + 2 * num_layers]
    out_ref = refs[-1]

    h = x_ref[...].astype(jnp.float32)
    for wt_ref, b_ref in zip(wt_refs, b_refs):
        h = _softplus(h)
        # Weights are pre-transposed and block-diagonal packed in the wrapper:
        #   [x_0 | ... | x_{P-1}] @ blockdiag(W.T, ..., W.T) == [x_k @ W.T]_k
        h = jnp.dot(h, wt_ref[...], preferred_element_type=jnp.float32)
        h = h + b_ref[...]                       # (1, P*C) broadcasts over rows
    out_ref[...] = _softplus(h).astype(out_ref.dtype)


def choose_pack(num_channels):
    """Lane-packing factor P so that P*C fills 128 (v5e) or 256 (v6e/v7x) lanes."""
    target = 256                       # v6e / v7x: match the 256-wide MXU push
    try:
        kind = jax.devices()[0].device_kind.lower()
        if "lite" in kind or "v5e" in kind:
            target = 128               # v5e: 128x128 MXU, 128 lanes is enough
    except Exception:
        pass
    for t in (target, 256, 128):
        if t >= num_channels and t % num_channels == 0:
            return t // num_channels
    return 1


def prepare_params(weights, biases, pack):
    """One-time parameter packing (do at load time, NOT per forward call).

    weights: list of [C, C] in PyTorch nn.Linear layout (out_features, in_features).
    biases:  list of [C].
    Returns (wts_bd, bs_p): wts_bd[i] is the (P*C, P*C) block-diagonal matrix
    with P copies of W_i.T on the diagonal; bs_p[i] is b_i tiled to (1, P*C).
    """
    wts_bd, bs_p = [], []
    eye_p = jnp.eye(pack, dtype=jnp.float32)
    for w, b in zip(weights, biases):
        wt = jnp.asarray(w, jnp.float32).T            # y = h @ W.T == h @ wt
        wts_bd.append(jnp.kron(eye_p, wt))            # block-diagonal, P copies
        bs_p.append(jnp.tile(jnp.asarray(b, jnp.float32).reshape(1, -1), (1, pack)))
    return wts_bd, bs_p


def imlp_forward(x, wts_bd, bs_p, pack, *, tile_n=4096):
    """x: [N, C]; wts_bd / bs_p: outputs of prepare_params(weights, biases, pack)."""
    num_layers = len(wts_bd)
    n, c = x.shape
    lanes = c * pack
    assert wts_bd[0].shape == (lanes, lanes)

    # Sublane granularity of the packed row blocks (covers sub-32-bit dtypes).
    itemsize = jnp.dtype(x.dtype).itemsize
    sub = {4: 8, 2: 16, 1: 32}.get(itemsize, 8)

    # Tile selection: bound worst-case padding by < one sublane tile per step
    # instead of up to (tile_n - 1) rows.
    np_rows = pl.cdiv(n, pack)                         # packed rows required
    tgt_tp = max(sub, tile_n // pack)                  # target packed rows/tile
    n_steps = max(1, pl.cdiv(np_rows, tgt_tp))
    tn_p = _round_up(pl.cdiv(np_rows, n_steps), sub)   # packed rows per tile
    np_pad = tn_p * n_steps
    n_pad = np_pad * pack

    if n_pad != n:
        # Zero-padded rows stay finite through softplus/matmul; sliced off below.
        x = jnp.pad(x, ((0, n_pad - n), (0, 0)))
    x_p = x.reshape(np_pad, lanes)                     # contiguous, lane-dense view

    row_spec = pl.BlockSpec((tn_p, lanes), lambda i: (i, 0))
    const_spec = lambda shape: pl.BlockSpec(shape, lambda i: (0, 0))

    in_specs = ([row_spec]
                + [const_spec((lanes, lanes)) for _ in wts_bd]   # VMEM-resident
                + [const_spec((1, lanes)) for _ in bs_p])

    out_p = pl.pallas_call(
        partial(_mlp_kernel, num_layers=num_layers),
        out_shape=jax.ShapeDtypeStruct((np_pad, lanes), x.dtype),
        grid=(n_steps,),
        in_specs=in_specs,
        out_specs=row_spec,
        compiler_params=pltpu.CompilerParams(
            dimension_semantics=("parallel",),   # v7x: split row axis across 2 TCs
        ),
    )(x_p, *wts_bd, *bs_p)

    return out_p.reshape(n_pad, c)[:n]


def reference_forward(x, weights, biases):
    h = x
    for w, b in zip(weights, biases):
        h = jax.nn.softplus(h)
        h = h @ w.T + b
    return jax.nn.softplus(h)


if __name__ == "__main__":
    num_channels = 64   # module default
    num_layers = 2      # module default
    batch = 8

    key = jax.random.PRNGKey(0)
    kx, *kws = jax.random.split(key, 1 + 2 * num_layers)

    x = jax.random.normal(kx, (batch, num_channels), dtype=jnp.float32)

    weights, biases = [], []
    for i in range(num_layers):
        kw, kb = kws[2 * i], kws[2 * i + 1]
        bound = 1.0 / jnp.sqrt(num_channels)
        weights.append(jax.random.uniform(
            kw, (num_channels, num_channels), jnp.float32, -bound, bound))
        biases.append(jax.random.uniform(
            kb, (num_channels,), jnp.float32, -bound, bound))

    # Parameter packing hoisted out of the forward path (done once).
    pack = choose_pack(num_channels)
    wts_bd, bs_p = prepare_params(weights, biases, pack)
    wts_bd = [jax.device_put(w) for w in wts_bd]
    bs_p = [jax.device_put(b) for b in bs_p]

    out = imlp_forward(x, wts_bd, bs_p, pack)
    out = jax.block_until_ready(out)

    ref = reference_forward(x, weights, biases)
    assert out.shape == (batch, num_channels)
    assert jnp.allclose(out, ref, atol=1e-5, rtol=1e-5), \
        f"max abs err {jnp.max(jnp.abs(out - ref))}"

    print("KERNEL_OK")
</pallas_src>

<mosaic_0001>
module attributes {stable_mosaic.version = 11 : i64} {
  func.func @_mlp_kernel(%arg0: i32, %arg1: memref<8x256xf32, #tpu.memory_space<vmem>>, %arg2: memref<256x256xf32, #tpu.memory_space<vmem>>, %arg3: memref<256x256xf32, #tpu.memory_space<vmem>>, %arg4: memref<1x256xf32, #tpu.memory_space<vmem>>, %arg5: memref<1x256xf32, #tpu.memory_space<vmem>>, %arg6: memref<8x256xf32, #tpu.memory_space<vmem>>) attributes {dimension_semantics = [#tpu.dimension_semantics<parallel>], iteration_bounds = array<i64: 1>, scalar_prefetch = 0 : i64, scratch_operands = 0 : i64, tpu.core_type = #tpu.core_type<tc>, window_params = [{transform_indices = @transform_0, window_bounds = array<i64: 8, 256>}, {pipeline_mode = #tpu.pipeline_mode<synchronous>, transform_indices = @transform_1, window_bounds = array<i64: 256, 256>}, {pipeline_mode = #tpu.pipeline_mode<synchronous>, transform_indices = @transform_2, window_bounds = array<i64: 256, 256>}, {pipeline_mode = #tpu.pipeline_mode<synchronous>, transform_indices = @transform_3, window_bounds = array<i64: 1, 256>}, {pipeline_mode = #tpu.pipeline_mode<synchronous>, transform_indices = @transform_4, window_bounds = array<i64: 1, 256>}, {transform_indices = @transform_5, window_bounds = array<i64: 8, 256>}]} {
    %c0 = arith.constant 0 : index
    %c0_0 = arith.constant 0 : index
    %0 = vector.load %arg1[%c0, %c0_0] : memref<8x256xf32, #tpu.memory_space<vmem>>, vector<8x256xf32>
    %cst = arith.constant 0.000000e+00 : f32
    %1 = vector.broadcast %cst : f32 to vector<8x256xf32>
    %2 = arith.maximumf %0, %1 : vector<8x256xf32>
    %3 = math.absf %0 : vector<8x256xf32>
    %cst_1 = arith.constant 0.000000e+00 : f32
    %4 = vector.broadcast %cst_1 : f32 to vector<8x256xf32>
    %5 = arith.subf %4, %3 : vector<8x256xf32>
    %6 = math.exp %5 : vector<8x256xf32>
    %7 = math.log1p %6 : vector<8x256xf32>
    %8 = arith.addf %2, %7 : vector<8x256xf32>
    %c0_2 = arith.constant 0 : index
    %c0_3 = arith.constant 0 : index
    %9 = vector.load %arg2[%c0_2, %c0_3] : memref<256x256xf32, #tpu.memory_space<vmem>>, vector<256x256xf32>
    %cst_4 = arith.constant dense<0.000000e+00> : vector<8x256xf32>
    %10 = tpu.matmul %8, %9, %cst_4 {dimension_numbers = #tpu.dot_dimension_numbers<[1], [0], [0], [1], [0, 0, 1, 1], [], []>} : vector<8x256xf32>, vector<256x256xf32>, vector<8x256xf32> -> vector<8x256xf32>
    %c0_5 = arith.constant 0 : index
    %c0_6 = arith.constant 0 : index
    %11 = vector.load %arg4[%c0_5, %c0_6] : memref<1x256xf32, #tpu.memory_space<vmem>>, vector<1x256xf32>
    %12 = vector.broadcast %11 : vector<1x256xf32> to vector<8x256xf32>
    %13 = arith.addf %10, %12 : vector<8x256xf32>
    %cst_7 = arith.constant 0.000000e+00 : f32
    %14 = vector.broadcast %cst_7 : f32 to vector<8x256xf32>
    %15 = arith.maximumf %13, %14 : vector<8x256xf32>
    %16 = math.absf %13 : vector<8x256xf32>
    %cst_8 = arith.constant 0.000000e+00 : f32
    %17 = vector.broadcast %cst_8 : f32 to vector<8x256xf32>
    %18 = arith.subf %17, %16 : vector<8x256xf32>
    %19 = math.exp %18 : vector<8x256xf32>
    %20 = math.log1p %19 : vector<8x256xf32>
    %21 = arith.addf %15, %20 : vector<8x256xf32>
    %c0_9 = arith.constant 0 : index
    %c0_10 = arith.constant 0 : index
    %22 = vector.load %arg3[%c0_9, %c0_10] : memref<256x256xf32, #tpu.memory_space<vmem>>, vector<256x256xf32>
    %cst_11 = arith.constant dense<0.000000e+00> : vector<8x256xf32>
    %23 = tpu.matmul %21, %22, %cst_11 {dimension_numbers = #tpu.dot_dimension_numbers<[1], [0], [0], [1], [0, 0, 1, 1], [], []>} : vector<8x256xf32>, vector<256x256xf32>, vector<8x256xf32> -> vector<8x256xf32>
    %c0_12 = arith.constant 0 : index
    %c0_13 = arith.constant 0 : index
    %24 = vector.load %arg5[%c0_12, %c0_13] : memref<1x256xf32, #tpu.memory_space<vmem>>, vector<1x256xf32>
    %25 = vector.broadcast %24 : vector<1x256xf32> to vector<8x256xf32>
    %26 = arith.addf %23, %25 : vector<8x256xf32>
    %cst_14 = arith.constant 0.000000e+00 : f32
    %27 = vector.broadcast %cst_14 : f32 to vector<8x256xf32>
    %28 = arith.maximumf %26, %27 : vector<8x256xf32>
    %29 = math.absf %26 : vector<8x256xf32>
    %cst_15 = arith.constant 0.000000e+00 : f32
    %30 = vector.broadcast %cst_15 : f32 to vector<8x256xf32>
    %31 = arith.subf %30, %29 : vector<8x256xf32>
    %32 = math.exp %31 : vector<8x256xf32>
    %33 = math.log1p %32 : vector<8x256xf32>
    %34 = arith.addf %28, %33 : vector<8x256xf32>
    %c0_16 = arith.constant 0 : index
    %c0_17 = arith.constant 0 : index
    %35 = vector.load %arg6[%c0_16, %c0_17] : memref<8x256xf32, #tpu.memory_space<vmem>>, vector<8x256xf32>
    tpu.vector_store %arg6[%c0_16, %c0_17], %34 {strides = array<i32>} : memref<8x256xf32, #tpu.memory_space<vmem>>, vector<8x256xf32>,
    return
  }
  func.func @transform_0(%arg0: i32) -> (i32, i32) {
    %c0_i32 = arith.constant 0 : i32
    %c0_i32_0 = arith.constant 0 : i32
    return %arg0, %c0_i32 : i32, i32
  }
  func.func @transform_1(%arg0: i32) -> (i32, i32) {
    %c0_i32 = arith.constant 0 : i32
    %c0_i32_0 = arith.constant 0 : i32
    %c0_i32_1 = arith.constant 0 : i32
    return %c0_i32, %c0_i32_0 : i32, i32
  }
  func.func @transform_2(%arg0: i32) -> (i32, i32) {
    %c0_i32 = arith.constant 0 : i32
    %c0_i32_0 = arith.constant 0 : i32
    %c0_i32_1 = arith.constant 0 : i32
    return %c0_i32, %c0_i32_0 : i32, i32
  }
  func.func @transform_3(%arg0: i32) -> (i32, i32) {
    %c0_i32 = arith.constant 0 : i32
    %c0_i32_0 = arith.constant 0 : i32
    %c0_i32_1 = arith.constant 0 : i32
    return %c0_i32, %c0_i32_0 : i32, i32
  }
  func.func @transform_4(%arg0: i32) -> (i32, i32) {
    %c0_i32 = arith.constant 0 : i32
    %c0_i32_0 = arith.constant 0 : i32
    %c0_i32_1 = arith.constant 0 : i32
    return %c0_i32, %c0_i32_0 : i32, i32
  }
  func.func @transform_5(%arg0: i32) -> (i32, i32) {
    %c0_i32 = arith.constant 0 : i32
    %c0_i32_0 = arith.constant 0 : i32
    return %arg0, %c0_i32 : i32, i32
  }
}

</mosaic_0001>

<llo_original>
// kernel: tpu_custom_call.1
$region0: #{tpu_custom_call.1}
  #allocation0 [shape = 'u32[]', space=smem, size = 0x4, offset = 0x4, fixed_abs, tag = 'smem constant byte address 0x4 - core index']
  #allocation1 [shape = 'u32[144,128]{1,0:T(1,128)}', space=vmem, size = 0x12000, scoped, tag = 'internal scratch']
  %s0 = inlined_call_operand.hbm [shape: f32[8,256], index: 0, kind: input, shape index: {}]
  %s1 = inlined_call_operand.hbm [shape: f32[256,256], index: 1, kind: input, shape index: {}]
  %s2 = inlined_call_operand.hbm [shape: f32[256,256], index: 2, kind: input, shape index: {}]
  %s3 = inlined_call_operand.vmem [shape: f32[1,256], index: 3, kind: input, shape index: {}]
  %s4 = inlined_call_operand.vmem [shape: f32[1,256], index: 4, kind: input, shape index: {}]
  %s5 = inlined_call_operand.hbm [shape: f32[8,256], index: 5, kind: output, shape index: {}]
  %s6 = sld [smem:[#allocation0]]
  $region42: #{tpu_custom_call.1} parent=0
    _
  %s8 = ssub.s32 1, %s6
  %s9 = scalar_select 0, %s8, %s6
  $region1: #{tpu_custom_call.1} parent=0
    #allocation2 [shape = 'u8[8192]{0}', space=vmem, size = 0x2000, scoped, tag = 'input window, operand 0, single buffered']
    #allocation3 [shape = 's32[1]{0}', space=sflag, size = 0x4, scoped, tag = 'scoped memory for tpu_custom_call.1']
    #allocation4 [shape = 's32[1]{0}', space=sflag, size = 0x4, scoped, tag = 'scoped memory for tpu_custom_call.1']
    #allocation5 [shape = 'u8[262144]{0}', space=vmem, size = 0x40000, scoped, tag = 'input window, operand 1, single buffered']
    #allocation6 [shape = 's32[1]{0}', space=sflag, size = 0x4, scoped, tag = 'scoped memory for tpu_custom_call.1']
    #allocation7 [shape = 'u8[262144]{0}', space=vmem, size = 0x40000, scoped, tag = 'input window, operand 2, single buffered']
    #allocation8 [shape = 'u8[8192]{0}', space=vmem, size = 0x2000, scoped, tag = 'output window, operand 0, single buffered']
    %10 = vsyncpa [#allocation3], 0
    %11 = vsyncpa [#allocation6], 0
    %12 = vsyncpa [#allocation4], 0
    // Predicated region
    $region2: #{tpu_custom_call.1} parent=1 // pred_check
      _
    $region3: #{tpu_custom_call.1} parent=1 // pred_check_branch
      %14 = sbr.rel (0) target = $region5
    $region4: #{tpu_custom_call.1} parent=1 // pred_region
      %s16 = ssub.s32 256, 256
      %17 = vsyncadd [#allocation3], %s16
      %s19 = sshll.u32 [#allocation2], 4
      %s20 = int_to_ptr.vmem [resolvable:$true] %s19
      %22 = dma.hbm_to_vmem [thread:$0]  %s0, 256, %s20, [#allocation3]
    $region5: #{tpu_custom_call.1} parent=1 // pred_fallthru
      _
    // Predicated region
    $region6: #{tpu_custom_call.1} parent=1 // pred_check
      _
    $region7: #{tpu_custom_call.1} parent=1 // pred_check_branch
      %24 = sbr.rel (0) target = $region9
    $region8: #{tpu_custom_call.1} parent=1 // pred_region
      %s26 = ssub.s32 8192, 8192
      %27 = vsyncadd [#allocation6], %s26
      %s28 = sshll.u32 [#allocation5], 4
      %s29 = int_to_ptr.vmem [resolvable:$true] %s28
      %34 = dma.hbm_to_vmem [thread:$0]  %s1, 8192, %s29, [#allocation6], 256, 256, 16
    $region9: #{tpu_custom_call.1} parent=1 // pred_fallthru
      _
    // Predicated region
    $region10: #{tpu_custom_call.1} parent=1 // pred_check
      _
    $region11: #{tpu_custom_call.1} parent=1 // pred_check_branch
      %36 = sbr.rel (0) target = $region13
    $region12: #{tpu_custom_call.1} parent=1 // pred_region
      %s38 = ssub.s32 8192, 8192
      %39 = vsyncadd [#allocation6], %s38
      %s40 = sshll.u32 [#allocation7], 4
      %s41 = int_to_ptr.vmem [resolvable:$true] %s40
      %46 = dma.hbm_to_vmem [thread:$0]  %s2, 8192, %s41, [#allocation6], 256, 256, 16
    $region13: #{tpu_custom_call.1} parent=1 // pred_fallthru
      _
    // Predicated region
    $region14: #{tpu_custom_call.1} parent=1 // pred_check
      _
    $region15: #{tpu_custom_call.1} parent=1 // pred_check_branch
      %48 = sbr.rel (0) target = $region17
    $region16: #{tpu_custom_call.1} parent=1 // pred_region
      _
    $region17: #{tpu_custom_call.1} parent=1 // pred_fallthru
      _
    // Predicated region
    $region18: #{tpu_custom_call.1} parent=1 // pred_check
      _
    $region19: #{tpu_custom_call.1} parent=1 // pred_check_branch
      %50 = sbr.rel (0) target = $region21
    $region20: #{tpu_custom_call.1} parent=1 // pred_region
      _
    $region21: #{tpu_custom_call.1} parent=1 // pred_fallthru
      _
    // Predicated region
    $region22: #{tpu_custom_call.1} parent=1 // pred_check
      _
    $region23: #{tpu_custom_call.1} parent=1 // pred_check_branch
      %52 = sbr.rel (0) target = $region25
    $region24: #{tpu_custom_call.1} parent=1 // pred_region
      %53 = dma.done [#allocation3], 256
    $region25: #{tpu_custom_call.1} parent=1 // pred_fallthru
      _
    // Predicated region
    $region26: #{tpu_custom_call.1} parent=1 // pred_check
      _
    $region27: #{tpu_custom_call.1} parent=1 // pred_check_branch
      %55 = sbr.rel (0) target = $region29
    $region28: #{tpu_custom_call.1} parent=1 // pred_region
      %56 = dma.done [#allocation6], 8192
    $region29: #{tpu_custom_call.1} parent=1 // pred_fallthru
      _
    // Predicated region
    $region30: #{tpu_custom_call.1} parent=1 // pred_check
      _
    $region31: #{tpu_custom_call.1} parent=1 // pred_check_branch
      %58 = sbr.rel (0) target = $region33
    $region32: #{tpu_custom_call.1} parent=1 // pred_region
      %59 = dma.done [#allocation6], 8192
    $region33: #{tpu_custom_call.1} parent=1 // pred_fallthru
      _
    %v60 = vld [vmem:[#allocation2] sm:$0xff]
    %v61 = vld [vmem:[#allocation2 + $0x8] sm:$0xff]
    %v62 = vmax.f32 %v60, 0.0
    %v63 = vmax.f32 %v61, 0.0
    %v64 = vand.u32 2147483647, %v60
    %v65 = vand.u32 2147483647, %v61
    %v66 = vsub.f32 0.0, %v64
    %v67 = vsub.f32 0.0, %v65
    %v68 = vmul.f32 %v66, 1.442695
    %v69 = vpow.pop %v68
    %v70 = vmul.f32 %v67, 1.442695
    %v71 = vpow.pop %v70
    %v72 = vadd.f32 %v69, 1.0
    %v73 = vlog2.pop %v72
    %v74 = vmul.f32 %v73, 0.6931472
    %v75 = vmul.f32 -0.5, %v69
    %v76 = vadd.f32 %v75, 1.0
    %v77 = vmul.f32 %v76, %v69
    %v78 = vand.u32 2147483647, %v69
    %vm79 = vcmp.lt.f32.partialorder %v78, 0.0004427343
    %v80 = vsel %vm79, %v77, %v74
    %v81 = vadd.f32 %v71, 1.0
    %v82 = vlog2.pop %v81
    %v83 = vmul.f32 %v82, 0.6931472
    %v84 = vmul.f32 -0.5, %v71
    %v85 = vadd.f32 %v84, 1.0
    %v86 = vmul.f32 %v85, %v71
    %v87 = vand.u32 2147483647, %v71
    %vm88 = vcmp.lt.f32.partialorder %v87, 0.0004427343
    %v89 = vsel %vm88, %v86, %v83
    %v90 = vadd.f32 %v62, %v80
    %v91 = vadd.f32 %v63, %v89
    %v92 = vld [vmem:[#allocation5] sm:$0xff]
    %v93 = vld [vmem:[#allocation5 + $0x8] sm:$0xff]
    %v94 = vld [vmem:[#allocation5 + $0x10] sm:$0xff]
    %v95 = vld [vmem:[#allocation5 + $0x18] sm:$0xff]
    %v96 = vld [vmem:[#allocation5 + $0x20] sm:$0xff]
    %v97 = vld [vmem:[#allocation5 + $0x28] sm:$0xff]
    %v98 = vld [vmem:[#allocation5 + $0x30] sm:$0xff]
    %v99 = vld [vmem:[#allocation5 + $0x38] sm:$0xff]
    %v100 = vld [vmem:[#allocation5 + $0x40] sm:$0xff]
    %v101 = vld [vmem:[#allocation5 + $0x48] sm:$0xff]
    %v102 = vld [vmem:[#allocation5 + $0x50] sm:$0xff]
    %v103 = vld [vmem:[#allocation5 + $0x58] sm:$0xff]
    %v104 = vld [vmem:[#allocation5 + $0x60] sm:$0xff]
    %v105 = vld [vmem:[#allocation5 + $0x68] sm:$0xff]
    %v106 = vld [vmem:[#allocation5 + $0x70] sm:$0xff]
    %v107 = vld [vmem:[#allocation5 + $0x78] sm:$0xff]
    %v108 = vld [vmem:[#allocation5 + $0x80] sm:$0xff]
    %v109 = vld [vmem:[#allocation5 + $0x88] sm:$0xff]
    %v110 = vld [vmem:[#allocation5 + $0x90] sm:$0xff]
    %v111 = vld [vmem:[#allocation5 + $0x98] sm:$0xff]
    %v112 = vld [vmem:[#allocation5 + $0xa0] sm:$0xff]
    %v113 = vld [vmem:[#allocation5 + $0xa8] sm:$0xff]
    %v114 = vld [vmem:[#allocation5 + $0xb0] sm:$0xff]
    %v115 = vld [vmem:[#allocation5 + $0xb8] sm:$0xff]
    %v116 = vld [vmem:[#allocation5 + $0xc0] sm:$0xff]
    %v117 = vld [vmem:[#allocation5 + $0xc8] sm:$0xff]
    %v118 = vld [vmem:[#allocation5 + $0xd0] sm:$0xff]
    %v119 = vld [vmem:[#allocation5 + $0xd8] sm:$0xff]
    %v120 = vld [vmem:[#allocation5 + $0xe0] sm:$0xff]
    %v121 = vld [vmem:[#allocation5 + $0xe8] sm:$0xff]
    %v122 = vld [vmem:[#allocation5 + $0xf0] sm:$0xff]
    %v123 = vld [vmem:[#allocation5 + $0xf8] sm:$0xff]
    %v124 = vld [vmem:[#allocation5 + $0x100] sm:$0xff]
    %v125 = vld [vmem:[#allocation5 + $0x108] sm:$0xff]
    %v126 = vld [vmem:[#allocation5 + $0x110] sm:$0xff]
    %v127 = vld [vmem:[#allocation5 + $0x118] sm:$0xff]
    %v128 = vld [vmem:[#allocation5 + $0x120] sm:$0xff]
    %v129 = vld [vmem:[#allocation5 + $0x128] sm:$0xff]
    %v130 = vld [vmem:[#allocation5 + $0x130] sm:$0xff]
    %v131 = vld [vmem:[#allocation5 + $0x138] sm:$0xff]
    %v132 = vld [vmem:[#allocation5 + $0x140] sm:$0xff]
    %v133 = vld [vmem:[#allocation5 + $0x148] sm:$0xff]
    %v134 = vld [vmem:[#allocation5 + $0x150] sm:$0xff]
    %v135 = vld [vmem:[#allocation5 + $0x158] sm:$0xff]
    %v136 = vld [vmem:[#allocation5 + $0x160] sm:$0xff]
    %v137 = vld [vmem:[#allocation5 + $0x168] sm:$0xff]
    %v138 = vld [vmem:[#allocation5 + $0x170] sm:$0xff]
    %v139 = vld [vmem:[#allocation5 + $0x178] sm:$0xff]
    %v140 = vld [vmem:[#allocation5 + $0x180] sm:$0xff]
    %v141 = vld [vmem:[#allocation5 + $0x188] sm:$0xff]
    %v142 = vld [vmem:[#allocation5 + $0x190] sm:$0xff]
    %v143 = vld [vmem:[#allocation5 + $0x198] sm:$0xff]
    %v144 = vld [vmem:[#allocation5 + $0x1a0] sm:$0xff]
    %v145 = vld [vmem:[#allocation5 + $0x1a8] sm:$0xff]
    %v146 = vld [vmem:[#allocation5 + $0x1b0] sm:$0xff]
    %v147 = vld [vmem:[#allocation5 + $0x1b8] sm:$0xff]
    %v148 = vld [vmem:[#allocation5 + $0x1c0] sm:$0xff]
    %v149 = vld [vmem:[#allocation5 + $0x1c8] sm:$0xff]
    %v150 = vld [vmem:[#allocation5 + $0x1d0] sm:$0xff]
    %v151 = vld [vmem:[#allocation5 + $0x1d8] sm:$0xff]
    %v152 = vld [vmem:[#allocation5 + $0x1e0] sm:$0xff]
    %v153 = vld [vmem:[#allocation5 + $0x1e8] sm:$0xff]
    %v154 = vld [vmem:[#allocation5 + $0x1f0] sm:$0xff]
    %v155 = vld [vmem:[#allocation5 + $0x1f8] sm:$0xff]
    %v156 = vld [vmem:[%s3] sm:$0x3]
    %v158 = vlaneseq
    %v159 = vshrl.u32 %v158, 7
    %v160 = vsub.s32 0, %v159
    %v161 = vrot.slane %v156, %v160
    %v162 = vlaneseq
    %v163 = vshrl.u32 %v162, 7
    %v164 = vsub.s32 1, %v163
    %v165 = vrot.slane %v156, %v164
    %168 = vmatprep.subr.mxu0 %v93
    %169 = vmatpush1.msra.mxu0 %v92
    %170 = vmatprep.subr.mxu0 %v95
    %171 = vmatpush1.msra.mxu0 %v94
    %172 = vmatprep.subr.mxu0 %v97
    %173 = vmatpush1.msra.mxu0 %v96
    %174 = vmatprep.subr.mxu0 %v99
    %175 = vmatpush1.msra.mxu0 %v98
    %176 = vmatprep.subr.mxu0 %v101
    %177 = vmatpush1.msra.mxu0 %v100
    %178 = vmatprep.subr.mxu0 %v103
    %179 = vmatpush1.msra.mxu0 %v102
    %180 = vmatprep.subr.mxu0 %v105
    %181 = vmatpush1.msra.mxu0 %v104
    %182 = vmatprep.subr.mxu0 %v107
    %183 = vmatpush1.msra.mxu0 %v106
    %184 = vmatprep.subr.mxu0 %v109
    %185 = vmatpush1.msra.mxu0 %v108
    %186 = vmatprep.subr.mxu0 %v111
    %187 = vmatpush1.msra.mxu0 %v110
    %188 = vmatprep.subr.mxu0 %v113
    %189 = vmatpush1.msra.mxu0 %v112
    %190 = vmatprep.subr.mxu0 %v115
    %191 = vmatpush1.msra.mxu0 %v114
    %192 = vmatprep.subr.mxu0 %v117
    %193 = vmatpush1.msra.mxu0 %v116
    %194 = vmatprep.subr.mxu0 %v119
    %195 = vmatpush1.msra.mxu0 %v118
    %196 = vmatprep.subr.mxu0 %v121
    %197 = vmatpush1.msra.mxu0 %v120
    %198 = vmatprep.subr.mxu0 %v123
    %199 = vmatpush1.msra.mxu0 %v122
    %200 = vmatprep.subr.mxu0 %v125
    %201 = vmatpush1.msra.mxu0 %v124
    %202 = vmatprep.subr.mxu0 %v127
    %203 = vmatpush1.msra.mxu0 %v126
    %204 = vmatprep.subr.mxu0 %v129
    %205 = vmatpush1.msra.mxu0 %v128
    %206 = vmatprep.subr.mxu0 %v131
    %207 = vmatpush1.msra.mxu0 %v130
    %208 = vmatprep.subr.mxu0 %v133
    %209 = vmatpush1.msra.mxu0 %v132
    %210 = vmatprep.subr.mxu0 %v135
    %211 = vmatpush1.msra.mxu0 %v134
    %212 = vmatprep.subr.mxu0 %v137
    %213 = vmatpush1.msra.mxu0 %v136
    %214 = vmatprep.subr.mxu0 %v139
    %215 = vmatpush1.msra.mxu0 %v138
    %216 = vmatprep.subr.mxu0 %v141
    %217 = vmatpush1.msra.mxu0 %v140
    %218 = vmatprep.subr.mxu0 %v143
    %219 = vmatpush1.msra.mxu0 %v142
    %220 = vmatprep.subr.mxu0 %v145
    %221 = vmatpush1.msra.mxu0 %v144
    %222 = vmatprep.subr.mxu0 %v147
    %223 = vmatpush1.msra.mxu0 %v146
    %224 = vmatprep.subr.mxu0 %v149
    %225 = vmatpush1.msra.mxu0 %v148
    %226 = vmatprep.subr.mxu0 %v151
    %227 = vmatpush1.msra.mxu0 %v150
    %228 = vmatprep.subr.mxu0 %v153
    %229 = vmatpush1.msra.mxu0 %v152
    %230 = vmatprep.subr.mxu0 %v155
    %231 = vmatpush1.msra.mxu0 %v154
    %232 = vmatprep.mubr.f32.mxu0 %v91
    %233 = vmatmul.mubr.f32.gmra.mrb[0].mxu0 %v90
    %v234 = vpop.f32.mrb[0].mxu0
    %v235 = vadd.f32 %v161, %v234
    %v236 = vpop.f32.mrb[0].mxu0
    %v237 = vadd.f32 %v165, %v236
    %238 = vdwg.mxu0
    %v239 = vmax.f32 %v235, 0.0
    %v240 = vmax.f32 %v237, 0.0
    %v241 = vand.u32 2147483647, %v235
    %v242 = vand.u32 2147483647, %v237
    %v243 = vsub.f32 0.0, %v241
    %v244 = vsub.f32 0.0, %v242
    %v245 = vmul.f32 %v243, 1.442695
    %v246 = vpow.pop %v245
    %v247 = vmul.f32 %v244, 1.442695
    %v248 = vpow.pop %v247
    %v249 = vadd.f32 %v246, 1.0
    %v250 = vlog2.pop %v249
    %v251 = vmul.f32 %v250, 0.6931472
    %v252 = vmul.f32 -0.5, %v246
    %v253 = vadd.f32 %v252, 1.0
    %v254 = vmul.f32 %v253, %v246
    %v255 = vand.u32 2147483647, %v246
    %vm256 = vcmp.lt.f32.partialorder %v255, 0.0004427343
    %v257 = vsel %vm256, %v254, %v251
    %v258 = vadd.f32 %v248, 1.0
    %v259 = vlog2.pop %v258
    %v260 = vmul.f32 %v259, 0.6931472
    %v261 = vmul.f32 -0.5, %v248
    %v262 = vadd.f32 %v261, 1.0
    %v263 = vmul.f32 %v262, %v248
    %v264 = vand.u32 2147483647, %v248
    %vm265 = vcmp.lt.f32.partialorder %v264, 0.0004427343
    %v266 = vsel %vm265, %v263, %v260
    %v267 = vadd.f32 %v239, %v257
    %v268 = vadd.f32 %v240, %v266
    %v269 = vld [vmem:[#allocation7] sm:$0xff]
    %v270 = vld [vmem:[#allocation7 + $0x8] sm:$0xff]
    %v271 = vld [vmem:[#allocation7 + $0x10] sm:$0xff]
    %v272 = vld [vmem:[#allocation7 + $0x18] sm:$0xff]
    %v273 = vld [vmem:[#allocation7 + $0x20] sm:$0xff]
    %v274 = vld [vmem:[#allocation7 + $0x28] sm:$0xff]
    %v275 = vld [vmem:[#allocation7 + $0x30] sm:$0xff]
    %v276 = vld [vmem:[#allocation7 + $0x38] sm:$0xff]
    %v277 = vld [vmem:[#allocation7 + $0x40] sm:$0xff]
    %v278 = vld [vmem:[#allocation7 + $0x48] sm:$0xff]
    %v279 = vld [vmem:[#allocation7 + $0x50] sm:$0xff]
    %v280 = vld [vmem:[#allocation7 + $0x58] sm:$0xff]
    %v281 = vld [vmem:[#allocation7 + $0x60] sm:$0xff]
    %v282 = vld [vmem:[#allocation7 + $0x68] sm:$0xff]
    %v283 = vld [vmem:[#allocation7 + $0x70] sm:$0xff]
    %v284 = vld [vmem:[#allocation7 + $0x78] sm:$0xff]
    %v285 = vld [vmem:[#allocation7 + $0x80] sm:$0xff]
    %v286 = vld [vmem:[#allocation7 + $0x88] sm:$0xff]
    %v287 = vld [vmem:[#allocation7 + $0x90] sm:$0xff]
    %v288 = vld [vmem:[#allocation7 + $0x98] sm:$0xff]
    %v289 = vld [vmem:[#allocation7 + $0xa0] sm:$0xff]
    %v290 = vld [vmem:[#allocation7 + $0xa8] sm:$0xff]
    %v291 = vld [vmem:[#allocation7 + $0xb0] sm:$0xff]
    %v292 = vld [vmem:[#allocation7 + $0xb8] sm:$0xff]
    %v293 = vld [vmem:[#allocation7 + $0xc0] sm:$0xff]
    %v294 = vld [vmem:[#allocation7 + $0xc8] sm:$0xff]
    %v295 = vld [vmem:[#allocation7 + $0xd0] sm:$0xff]
    %v296 = vld [vmem:[#allocation7 + $0xd8] sm:$0xff]
    %v297 = vld [vmem:[#allocation7 + $0xe0] sm:$0xff]
    %v298 = vld [vmem:[#allocation7 + $0xe8] sm:$0xff]
    %v299 = vld [vmem:[#allocation7 + $0xf0] sm:$0xff]
    %v300 = vld [vmem:[#allocation7 + $0xf8] sm:$0xff]
    %v301 = vld [vmem:[#allocation7 + $0x100] sm:$0xff]
    %v302 = vld [vmem:[#allocation7 + $0x108] sm:$0xff]
    %v303 = vld [vmem:[#allocation7 + $0x110] sm:$0xff]
    %v304 = vld [vmem:[#allocation7 + $0x118] sm:$0xff]
    %v305 = vld [vmem:[#allocation7 + $0x120] sm:$0xff]
    %v306 = vld [vmem:[#allocation7 + $0x128] sm:$0xff]
    %v307 = vld [vmem:[#allocation7 + $0x130] sm:$0xff]
    %v308 = vld [vmem:[#allocation7 + $0x138] sm:$0xff]
    %v309 = vld [vmem:[#allocation7 + $0x140] sm:$0xff]
    %v310 = vld [vmem:[#allocation7 + $0x148] sm:$0xff]
    %v311 = vld [vmem:[#allocation7 + $0x150] sm:$0xff]
    %v312 = vld [vmem:[#allocation7 + $0x158] sm:$0xff]
    %v313 = vld [vmem:[#allocation7 + $0x160] sm:$0xff]
    %v314 = vld [vmem:[#allocation7 + $0x168] sm:$0xff]
    %v315 = vld [vmem:[#allocation7 + $0x170] sm:$0xff]
    %v316 = vld [vmem:[#allocation7 + $0x178] sm:$0xff]
    %v317 = vld [vmem:[#allocation7 + $0x180] sm:$0xff]
    %v318 = vld [vmem:[#allocation7 + $0x188] sm:$0xff]
    %v319 = vld [vmem:[#allocation7 + $0x190] sm:$0xff]
    %v320 = vld [vmem:[#allocation7 + $0x198] sm:$0xff]
    %v321 = vld [vmem:[#allocation7 + $0x1a0] sm:$0xff]
    %v322 = vld [vmem:[#allocation7 + $0x1a8] sm:$0xff]
    %v323 = vld [vmem:[#allocation7 + $0x1b0] sm:$0xff]
    %v324 = vld [vmem:[#allocation7 + $0x1b8] sm:$0xff]
    %v325 = vld [vmem:[#allocation7 + $0x1c0] sm:$0xff]
    %v326 = vld [vmem:[#allocation7 + $0x1c8] sm:$0xff]
    %v327 = vld [vmem:[#allocation7 + $0x1d0] sm:$0xff]
    %v328 = vld [vmem:[#allocation7 + $0x1d8] sm:$0xff]
    %v329 = vld [vmem:[#allocation7 + $0x1e0] sm:$0xff]
    %v330 = vld [vmem:[#allocation7 + $0x1e8] sm:$0xff]
    %v331 = vld [vmem:[#allocation7 + $0x1f0] sm:$0xff]
    %v332 = vld [vmem:[#allocation7 + $0x1f8] sm:$0xff]
    %v333 = vld [vmem:[%s4] sm:$0x3]
    %v335 = vlaneseq
    %v336 = vshrl.u32 %v335, 7
    %v337 = vsub.s32 0, %v336
    %v338 = vrot.slane %v333, %v337
    %v339 = vlaneseq
    %v340 = vshrl.u32 %v339, 7
    %v341 = vsub.s32 1, %v340
    %v342 = vrot.slane %v333, %v341
    %345 = vmatprep.subr.mxu0 %v270
    %346 = vmatpush1.msra.mxu0 %v269
    %347 = vmatprep.subr.mxu0 %v272
    %348 = vmatpush1.msra.mxu0 %v271
    %349 = vmatprep.subr.mxu0 %v274
    %350 = vmatpush1.msra.mxu0 %v273
    %351 = vmatprep.subr.mxu0 %v276
    %352 = vmatpush1.msra.mxu0 %v275
    %353 = vmatprep.subr.mxu0 %v278
    %354 = vmatpush1.msra.mxu0 %v277
    %355 = vmatprep.subr.mxu0 %v280
    %356 = vmatpush1.msra.mxu0 %v279
    %357 = vmatprep.subr.mxu0 %v282
    %358 = vmatpush1.msra.mxu0 %v281
    %359 = vmatprep.subr.mxu0 %v284
    %360 = vmatpush1.msra.mxu0 %v283
    %361 = vmatprep.subr.mxu0 %v286
    %362 = vmatpush1.msra.mxu0 %v285
    %363 = vmatprep.subr.mxu0 %v288
    %364 = vmatpush1.msra.mxu0 %v287
    %365 = vmatprep.subr.mxu0 %v290
    %366 = vmatpush1.msra.mxu0 %v289
    %367 = vmatprep.subr.mxu0 %v292
    %368 = vmatpush1.msra.mxu0 %v291
    %369 = vmatprep.subr.mxu0 %v294
    %370 = vmatpush1.msra.mxu0 %v293
    %371 = vmatprep.subr.mxu0 %v296
    %372 = vmatpush1.msra.mxu0 %v295
    %373 = vmatprep.subr.mxu0 %v298
    %374 = vmatpush1.msra.mxu0 %v297
    %375 = vmatprep.subr.mxu0 %v300
    %376 = vmatpush1.msra.mxu0 %v299
    %377 = vmatprep.subr.mxu0 %v302
    %378 = vmatpush1.msra.mxu0 %v301
    %379 = vmatprep.subr.mxu0 %v304
    %380 = vmatpush1.msra.mxu0 %v303
    %381 = vmatprep.subr.mxu0 %v306
    %382 = vmatpush1.msra.mxu0 %v305
    %383 = vmatprep.subr.mxu0 %v308
    %384 = vmatpush1.msra.mxu0 %v307
    %385 = vmatprep.subr.mxu0 %v310
    %386 = vmatpush1.msra.mxu0 %v309
    %387 = vmatprep.subr.mxu0 %v312
    %388 = vmatpush1.msra.mxu0 %v311
    %389 = vmatprep.subr.mxu0 %v314
    %390 = vmatpush1.msra.mxu0 %v313
    %391 = vmatprep.subr.mxu0 %v316
    %392 = vmatpush1.msra.mxu0 %v315
    %393 = vmatprep.subr.mxu0 %v318
    %394 = vmatpush1.msra.mxu0 %v317
    %395 = vmatprep.subr.mxu0 %v320
    %396 = vmatpush1.msra.mxu0 %v319
    %397 = vmatprep.subr.mxu0 %v322
    %398 = vmatpush1.msra.mxu0 %v321
    %399 = vmatprep.subr.mxu0 %v324
    %400 = vmatpush1.msra.mxu0 %v323
    %401 = vmatprep.subr.mxu0 %v326
    %402 = vmatpush1.msra.mxu0 %v325
    %403 = vmatprep.subr.mxu0 %v328
    %404 = vmatpush1.msra.mxu0 %v327
    %405 = vmatprep.subr.mxu0 %v330
    %406 = vmatpush1.msra.mxu0 %v329
    %407 = vmatprep.subr.mxu0 %v332
    %408 = vmatpush1.msra.mxu0 %v331
    %409 = vmatprep.mubr.f32.mxu0 %v268
    %410 = vmatmul.mubr.f32.gmra.mrb[0].mxu0 %v267
    %v411 = vpop.f32.mrb[0].mxu0
    %v412 = vadd.f32 %v338, %v411
    %v413 = vpop.f32.mrb[0].mxu0
    %v414 = vadd.f32 %v342, %v413
    %415 = vdwg.mxu0
    %v416 = vmax.f32 %v412, 0.0
    %v417 = vmax.f32 %v414, 0.0
    %v418 = vand.u32 2147483647, %v412
    %v419 = vand.u32 2147483647, %v414
    %v420 = vsub.f32 0.0, %v418
    %v421 = vsub.f32 0.0, %v419
    %v422 = vmul.f32 %v420, 1.442695
    %v423 = vpow.pop %v422
    %v424 = vmul.f32 %v421, 1.442695
    %v425 = vpow.pop %v424
    %v426 = vadd.f32 %v423, 1.0
    %v427 = vlog2.pop %v426
    %v428 = vmul.f32 %v427, 0.6931472
    %v429 = vmul.f32 -0.5, %v423
    %v430 = vadd.f32 %v429, 1.0
    %v431 = vmul.f32 %v430, %v423
    %v432 = vand.u32 2147483647, %v423
    %vm433 = vcmp.lt.f32.partialorder %v432, 0.0004427343
    %v434 = vsel %vm433, %v431, %v428
    %v435 = vadd.f32 %v425, 1.0
    %v436 = vlog2.pop %v435
    %v437 = vmul.f32 %v436, 0.6931472
    %v438 = vmul.f32 -0.5, %v425
    %v439 = vadd.f32 %v438, 1.0
    %v440 = vmul.f32 %v439, %v425
    %v441 = vand.u32 2147483647, %v425
    %vm442 = vcmp.lt.f32.partialorder %v441, 0.0004427343
    %v443 = vsel %vm442, %v440, %v437
    %v444 = vadd.f32 %v416, %v434
    %v445 = vadd.f32 %v417, %v443
    %446 = vst [vmem:[#allocation8] sm:$0xff] %v444
    %447 = vst [vmem:[#allocation8 + $0x8] sm:$0xff] %v445
    // Predicated region
    $region34: #{tpu_custom_call.1} parent=1 // pred_check
      _
    $region35: #{tpu_custom_call.1} parent=1 // pred_check_branch
      %449 = sbr.rel (0) target = $region37
    $region36: #{tpu_custom_call.1} parent=1 // pred_region
      %s451 = ssub.s32 256, 256
      %452 = vsyncadd [#allocation4], %s451
      %s454 = sshll.u32 [#allocation8], 4
      %s455 = int_to_ptr.vmem [resolvable:$true] %s454
      %457 = dma.vmem_to_hbm [thread:$0]  %s455, 256, %s5, [#allocation4]
    $region37: #{tpu_custom_call.1} parent=1 // pred_fallthru
      _
    // Predicated region
    $region38: #{tpu_custom_call.1} parent=1 // pred_check
      _
    $region39: #{tpu_custom_call.1} parent=1 // pred_check_branch
      %459 = sbr.rel (0) target = $region41
    $region40: #{tpu_custom_call.1} parent=1 // pred_region
      %460 = dma.done [#allocation4], 256
    $region41: #{tpu_custom_call.1} parent=1 // pred_fallthru
      _
    %461 = vsyncpa [#allocation3], 1
    %462 = vsyncpa [#allocation6], 1
    %463 = vsyncpa [#allocation4], 1

</llo_original>
